<compile_context>
chip_gen: v7x
topology: tpu7x:2x2x1
jax: 0.10.0
libtpu: 0.0.40
codegen_flags: <defaults>
</compile_context>

<pallas_src>
import functools

import jax
import jax.numpy as jnp
from jax.experimental import pallas as pl
from jax.experimental.pallas import tpu as pltpu


def _asmloc_loss_kernel(vid_label_ref, fg_cls_ref, bg_cls_ref, out_ref, *,
                        lamb_fg, lamb_bg, lamb_abg):
    """Computes the three classification losses + their static-weighted sum.

    out_ref (SMEM, shape (4,)):
      out_ref[0] = cls_loss = lamb_fg*fg + lamb_bg*bg + lamb_abg*abg
      out_ref[1] = fg_loss  = cls_criterion(fg_cls, fg_label)
      out_ref[2] = bg_loss  = cls_criterion(bg_cls, bg_label)
      out_ref[3] = abg_loss = cls_criterion(bg_cls, fg_label)
    """
    B, Cp1 = fg_cls_ref.shape
    C = vid_label_ref.shape[1]

    vid_label = vid_label_ref[...].astype(jnp.float32)      # (B, C)
    fg_cls = fg_cls_ref[...].astype(jnp.float32)            # (B, C+1)
    bg_cls = bg_cls_ref[...].astype(jnp.float32)            # (B, C+1)

    # log(clamp(x, 1e-7)); logp_bg computed once, reused for bg_loss & abg_loss.
    logp_fg = jnp.log(jnp.maximum(fg_cls, 1e-7))            # (B, C+1)
    logp_bg = jnp.log(jnp.maximum(bg_cls, 1e-7))            # (B, C+1)

    # fg_label = hstack(vid_label, 0) / rowsum(vid_label): the appended column
    # contributes nothing, so reduce over the first C lanes only; apply the
    # normalization AFTER the reduction via ONE exact reciprocal per row.
    label_sum = jnp.sum(vid_label, axis=-1, keepdims=True)                  # (B, 1)
    inv_ls = 1.0 / label_sum                                                # exact, (B, 1)
    fg_dot = jnp.sum(logp_fg[:, :C] * vid_label, axis=-1, keepdims=True)    # (B, 1)
    abg_dot = jnp.sum(logp_bg[:, :C] * vid_label, axis=-1, keepdims=True)   # (B, 1)

    # bg_label normalizes to a one-hot on the last class column -> the class
    # reduction is just the last lane: static slice, no iota/select/XLU reduce.
    bg_dot = logp_bg[:, Cp1 - 1:Cp1]                                        # (B, 1)

    inv_batch = 1.0 / float(B)
    fg_loss = -(jnp.sum(fg_dot * inv_ls) * inv_batch)
    bg_loss = -(jnp.sum(bg_dot) * inv_batch)
    abg_loss = -(jnp.sum(abg_dot * inv_ls) * inv_batch)

    # Static lambdas -> fold the weighted combination in-kernel (no XLA epilogue).
    out_ref[0] = lamb_fg * fg_loss + lamb_bg * bg_loss + lamb_abg * abg_loss
    out_ref[1] = fg_loss
    out_ref[2] = bg_loss
    out_ref[3] = abg_loss


@functools.partial(jax.jit, static_argnames=("lamb_fg", "lamb_bg", "lamb_abg"))
def asmloc_base_loss(vid_label, fg_cls, bg_cls, temp_att=None, cas=None,
                     fg_cas=None, bg_cas=None,
                     lamb_fg=1.0, lamb_bg=1.0, lamb_abg=1.0):
    """JAX/Pallas equivalent of ASMLoc_Base_Loss.forward.

    Returns (cls_loss, fg_loss, bg_loss, abg_loss); the PyTorch module's
    loss_dict is a host-side convenience built from the last three scalars.
    """
    del temp_att, cas, fg_cas, bg_cas  # unused by the reference forward

    kernel = functools.partial(_asmloc_loss_kernel,
                               lamb_fg=float(lamb_fg),
                               lamb_bg=float(lamb_bg),
                               lamb_abg=float(lamb_abg))
    vmem = pl.BlockSpec(memory_space=pltpu.MemorySpace.VMEM)
    losses = pl.pallas_call(
        kernel,
        out_shape=jax.ShapeDtypeStruct((4,), jnp.float32),
        in_specs=[vmem, vmem, vmem],
        out_specs=pl.BlockSpec(memory_space=pltpu.MemorySpace.SMEM),
    )(vid_label, fg_cls, bg_cls)  # native dtypes; upcast happens in-kernel

    return losses[0], losses[1], losses[2], losses[3]


def _reference(vid_label, fg_cls, bg_cls, lamb_fg, lamb_bg, lamb_abg):
    """Pure-jnp reference mirroring the PyTorch module, for a sanity check."""
    vid_label = vid_label.astype(jnp.float32)
    b = vid_label.shape[0]
    fg_label = jnp.concatenate([vid_label, jnp.zeros((b, 1))], axis=1)
    bg_label = jnp.concatenate([jnp.zeros_like(vid_label), jnp.ones((b, 1))], axis=1)
    fg_label = fg_label / jnp.sum(fg_label, axis=1, keepdims=True)
    bg_label = bg_label / jnp.sum(bg_label, axis=1, keepdims=True)

    def crit(inputs, label):
        return -jnp.mean(jnp.sum(jnp.log(jnp.clip(inputs, 1e-7)) * label, axis=-1))

    fg_loss = crit(fg_cls.astype(jnp.float32), fg_label)
    bg_loss = crit(bg_cls.astype(jnp.float32), bg_label)
    abg_loss = crit(bg_cls.astype(jnp.float32), fg_label)
    return lamb_fg * fg_loss + lamb_bg * bg_loss + lamb_abg * abg_loss, \
        fg_loss, bg_loss, abg_loss


if __name__ == "__main__":
    # Small deterministic problem: B=2 videos, C=20 action classes (THUMOS14),
    # T=8 temporal snippets for the (unused) attention / CAS tensors.
    B, C, T = 2, 20, 8
    lamb_fg, lamb_bg, lamb_abg = 1.0, 1.0, 1.0

    key = jax.random.PRNGKey(0)
    k1, k2, k3, k4, k5, k6, k7 = jax.random.split(key, 7)

    # Multi-hot video-level labels with at least one positive class per video
    # (all-zero rows would produce inf/NaN, same as the PyTorch reference).
    vid_label = (jax.random.uniform(k1, (B, C)) > 0.7).astype(jnp.float32)
    vid_label = vid_label.at[:, 0].set(1.0)

    # Classification scores are softmax distributions over C+1 classes.
    fg_cls = jax.nn.softmax(jax.random.normal(k2, (B, C + 1)), axis=-1)
    bg_cls = jax.nn.softmax(jax.random.normal(k3, (B, C + 1)), axis=-1)

    # Unused-by-forward tensors (shape fidelity only).
    temp_att = jax.nn.sigmoid(jax.random.normal(k4, (B, T, 1)))
    cas = jax.random.normal(k5, (B, T, C + 1))
    fg_cas = jax.random.normal(k6, (B, T, C + 1))
    bg_cas = jax.random.normal(k7, (B, T, C + 1))

    loss, fg_loss, bg_loss, abg_loss = asmloc_base_loss(
        vid_label, fg_cls, bg_cls, temp_att, cas, fg_cas, bg_cas,
        lamb_fg=lamb_fg, lamb_bg=lamb_bg, lamb_abg=lamb_abg)
    jax.block_until_ready(loss)

    loss_dict = {
        "fg_loss": float(fg_loss),
        "bg_loss": float(bg_loss),
        "abg_loss": float(abg_loss),
    }

    # Sanity check against a pure-jnp reference of the PyTorch semantics.
    ref_loss, ref_fg, ref_bg, ref_abg = _reference(
        vid_label, fg_cls, bg_cls, lamb_fg, lamb_bg, lamb_abg)
    assert jnp.allclose(loss, ref_loss, atol=1e-5, rtol=1e-5)
    assert jnp.allclose(fg_loss, ref_fg, atol=1e-5, rtol=1e-5)
    assert jnp.allclose(bg_loss, ref_bg, atol=1e-5, rtol=1e-5)
    assert jnp.allclose(abg_loss, ref_abg, atol=1e-5, rtol=1e-5)

    print("KERNEL_OK")
</pallas_src>

<mosaic_0001>
module attributes {stable_mosaic.version = 11 : i64} {
  func.func @_asmloc_loss_kernel(%arg0: memref<2x20xf32, #tpu.memory_space<vmem>>, %arg1: memref<2x21xf32, #tpu.memory_space<vmem>>, %arg2: memref<2x21xf32, #tpu.memory_space<vmem>>, %arg3: memref<4xf32, #tpu.memory_space<smem>>) attributes {dimension_semantics = [], scalar_prefetch = 0 : i64, scratch_operands = 0 : i64, tpu.core_type = #tpu.core_type<tc>} {
    %c0 = arith.constant 0 : index
    %c0_0 = arith.constant 0 : index
    %0 = vector.load %arg0[%c0, %c0_0] : memref<2x20xf32, #tpu.memory_space<vmem>>, vector<2x20xf32>
    %c0_1 = arith.constant 0 : index
    %c0_2 = arith.constant 0 : index
    %1 = vector.load %arg1[%c0_1, %c0_2] : memref<2x21xf32, #tpu.memory_space<vmem>>, vector<2x21xf32>
    %c0_3 = arith.constant 0 : index
    %c0_4 = arith.constant 0 : index
    %2 = vector.load %arg2[%c0_3, %c0_4] : memref<2x21xf32, #tpu.memory_space<vmem>>, vector<2x21xf32>
    %cst = arith.constant 1.000000e-07 : f32
    %3 = vector.broadcast %cst : f32 to vector<2x21xf32>
    %4 = arith.maximumf %1, %3 : vector<2x21xf32>
    %5 = math.log %4 : vector<2x21xf32>
    %cst_5 = arith.constant 1.000000e-07 : f32
    %6 = vector.broadcast %cst_5 : f32 to vector<2x21xf32>
    %7 = arith.maximumf %2, %6 : vector<2x21xf32>
    %8 = math.log %7 : vector<2x21xf32>
    %cst_6 = arith.constant dense<0.000000e+00> : vector<2xf32>
    %9 = vector.multi_reduction <add>, %0, %cst_6 [1] : vector<2x20xf32> to vector<2xf32>
    %10 = vector.shape_cast %9 : vector<2xf32> to vector<2x1xf32>
    %cst_7 = arith.constant 1.000000e+00 : f32
    %11 = vector.broadcast %cst_7 : f32 to vector<2x1xf32>
    %12 = arith.divf %11, %10 : vector<2x1xf32>
    %13 = vector.extract_strided_slice %5 {offsets = [0, 0], sizes = [2, 20], strides = [1, 1]} : vector<2x21xf32> to vector<2x20xf32>
    %14 = arith.mulf %13, %0 : vector<2x20xf32>
    %cst_8 = arith.constant dense<0.000000e+00> : vector<2xf32>
    %15 = vector.multi_reduction <add>, %14, %cst_8 [1] : vector<2x20xf32> to vector<2xf32>
    %16 = vector.shape_cast %15 : vector<2xf32> to vector<2x1xf32>
    %17 = vector.extract_strided_slice %8 {offsets = [0, 0], sizes = [2, 20], strides = [1, 1]} : vector<2x21xf32> to vector<2x20xf32>
    %18 = arith.mulf %17, %0 : vector<2x20xf32>
    %cst_9 = arith.constant dense<0.000000e+00> : vector<2xf32>
    %19 = vector.multi_reduction <add>, %18, %cst_9 [1] : vector<2x20xf32> to vector<2xf32>
    %20 = vector.shape_cast %19 : vector<2xf32> to vector<2x1xf32>
    %21 = vector.extract_strided_slice %8 {offsets = [0, 20], sizes = [2, 1], strides = [1, 1]} : vector<2x21xf32> to vector<2x1xf32>
    %22 = arith.mulf %16, %12 : vector<2x1xf32>
    %23 = vector.shape_cast %22 : vector<2x1xf32> to vector<1x2x1xf32>
    %cst_10 = arith.constant dense<0.000000e+00> : vector<1xf32>
    %24 = vector.multi_reduction <add>, %23, %cst_10 [1, 2] : vector<1x2x1xf32> to vector<1xf32>
    %25 = vector.shape_cast %24 : vector<1xf32> to vector<1x1x1xf32>
    %26 = vector.extract %25[0, 0, 0] : f32 from vector<1x1x1xf32>
    %cst_11 = arith.constant 5.000000e-01 : f32
    %27 = arith.mulf %26, %cst_11 : f32
    %cst_12 = arith.constant 0.000000e+00 : f32
    %28 = arith.subf %cst_12, %27 : f32
    %29 = vector.shape_cast %21 : vector<2x1xf32> to vector<1x2x1xf32>
    %cst_13 = arith.constant dense<0.000000e+00> : vector<1xf32>
    %30 = vector.multi_reduction <add>, %29, %cst_13 [1, 2] : vector<1x2x1xf32> to vector<1xf32>
    %31 = vector.shape_cast %30 : vector<1xf32> to vector<1x1x1xf32>
    %32 = vector.extract %31[0, 0, 0] : f32 from vector<1x1x1xf32>
    %cst_14 = arith.constant 5.000000e-01 : f32
    %33 = arith.mulf %32, %cst_14 : f32
    %cst_15 = arith.constant 0.000000e+00 : f32
    %34 = arith.subf %cst_15, %33 : f32
    %35 = arith.mulf %20, %12 : vector<2x1xf32>
    %36 = vector.shape_cast %35 : vector<2x1xf32> to vector<1x2x1xf32>
    %cst_16 = arith.constant dense<0.000000e+00> : vector<1xf32>
    %37 = vector.multi_reduction <add>, %36, %cst_16 [1, 2] : vector<1x2x1xf32> to vector<1xf32>
    %38 = vector.shape_cast %37 : vector<1xf32> to vector<1x1x1xf32>
    %39 = vector.extract %38[0, 0, 0] : f32 from vector<1x1x1xf32>
    %cst_17 = arith.constant 5.000000e-01 : f32
    %40 = arith.mulf %39, %cst_17 : f32
    %cst_18 = arith.constant 0.000000e+00 : f32
    %41 = arith.subf %cst_18, %40 : f32
    %cst_19 = arith.constant 1.000000e+00 : f32
    %42 = arith.mulf %cst_19, %28 : f32
    %cst_20 = arith.constant 1.000000e+00 : f32
    %43 = arith.mulf %cst_20, %34 : f32
    %44 = arith.addf %42, %43 : f32
    %cst_21 = arith.constant 1.000000e+00 : f32
    %45 = arith.mulf %cst_21, %41 : f32
    %46 = arith.addf %44, %45 : f32
    %c0_22 = arith.constant 0 : index
    %47 = memref.load %arg3[%c0_22] : memref<4xf32, #tpu.memory_space<smem>>
    memref.store %46, %arg3[%c0_22] : memref<4xf32, #tpu.memory_space<smem>>
    %c1 = arith.constant 1 : index
    %48 = memref.load %arg3[%c1] : memref<4xf32, #tpu.memory_space<smem>>
    memref.store %28, %arg3[%c1] : memref<4xf32, #tpu.memory_space<smem>>
    %c2 = arith.constant 2 : index
    %49 = memref.load %arg3[%c2] : memref<4xf32, #tpu.memory_space<smem>>
    memref.store %34, %arg3[%c2] : memref<4xf32, #tpu.memory_space<smem>>
    %c3 = arith.constant 3 : index
    %50 = memref.load %arg3[%c3] : memref<4xf32, #tpu.memory_space<smem>>
    memref.store %41, %arg3[%c3] : memref<4xf32, #tpu.memory_space<smem>>
    return
  }
}

</mosaic_0001>

<llo_original>
// kernel: asmloc_base_loss.1
$region0: #{asmloc_base_loss.1}
  #allocation0 [shape = 'u32[]', space=smem, size = 0x4, offset = 0x4, fixed_abs, tag = 'smem constant byte address 0x4 - core index']
  #allocation1 [shape = 'u32[144,128]{1,0:T(1,128)}', space=vmem, size = 0x12000, scoped, tag = 'internal scratch']
  %s0 = inlined_call_operand.hbm [shape: f32[2,20], index: 0, kind: input, shape index: {}]
  %s1 = inlined_call_operand.vmem [shape: f32[2,21], index: 1, kind: input, shape index: {}]
  %s2 = inlined_call_operand.vmem [shape: f32[2,21], index: 2, kind: input, shape index: {}]
  %s3 = inlined_call_operand.vmem [shape: f32[4], index: 3, kind: output, shape index: {}]
  %s4 = sld [smem:[#allocation0]]
  $region26: #{asmloc_base_loss.1} parent=0
    _
  %s6 = ssub.s32 1, %s4
  %s7 = scalar_select 0, %s6, %s4
  $region1: #{asmloc_base_loss.1} parent=0
    #allocation2 [shape = 'u8[1024]{0}', space=vmem, size = 0x400, scoped, tag = 'input window, operand 0, single buffered']
    #allocation3 [shape = 's32[1]{0}', space=sflag, size = 0x4, scoped, tag = 'scoped memory for asmloc_base_loss.1']
    #allocation4 [shape = 's32[1]{0}', space=sflag, size = 0x4, scoped, tag = 'scoped memory for asmloc_base_loss.1']
    #allocation5 [shape = 'u8[512]{0}', space=smem, size = 0x200, scoped, tag = 'output window, operand 0, single buffered']
    %8 = vsyncpa [#allocation3], 0
    %9 = vsyncpa [#allocation4], 0
    // Predicated region
    $region2: #{asmloc_base_loss.1} parent=1 // pred_check
      _
    $region3: #{asmloc_base_loss.1} parent=1 // pred_check_branch
      %11 = sbr.rel (0) target = $region5
    $region4: #{asmloc_base_loss.1} parent=1 // pred_region
      %s13 = ssub.s32 32, 32
      %14 = vsyncadd [#allocation3], %s13
      %s16 = sshll.u32 [#allocation2], 4
      %s17 = int_to_ptr.vmem [resolvable:$true] %s16
      %19 = dma.hbm_to_vmem [thread:$0]  %s0, 32, %s17, [#allocation3]
    $region5: #{asmloc_base_loss.1} parent=1 // pred_fallthru
      _
    // Predicated region
    $region6: #{asmloc_base_loss.1} parent=1 // pred_check
      _
    $region7: #{asmloc_base_loss.1} parent=1 // pred_check_branch
      %21 = sbr.rel (0) target = $region9
    $region8: #{asmloc_base_loss.1} parent=1 // pred_region
      _
    $region9: #{asmloc_base_loss.1} parent=1 // pred_fallthru
      _
    // Predicated region
    $region10: #{asmloc_base_loss.1} parent=1 // pred_check
      _
    $region11: #{asmloc_base_loss.1} parent=1 // pred_check_branch
      %23 = sbr.rel (0) target = $region13
    $region12: #{asmloc_base_loss.1} parent=1 // pred_region
      _
    $region13: #{asmloc_base_loss.1} parent=1 // pred_fallthru
      _
    // Predicated region
    $region14: #{asmloc_base_loss.1} parent=1 // pred_check
      _
    $region15: #{asmloc_base_loss.1} parent=1 // pred_check_branch
      %25 = sbr.rel (0) target = $region17
    $region16: #{asmloc_base_loss.1} parent=1 // pred_region
      %26 = dma.done [#allocation3], 32
    $region17: #{asmloc_base_loss.1} parent=1 // pred_fallthru
      _
    %v27 = vld [vmem:[#allocation2] sm:$0x3]
    %v28 = vld [vmem:[%s1] sm:$0x3]
    %v29 = vld [vmem:[%s2] sm:$0x3]
    %v30 = vmax.f32 %v28, 1e-07
    %v31 = vlog2.pop %v30
    %v32 = vmul.f32 %v31, 0.6931472
    %v33 = vmax.f32 %v29, 1e-07
    %v34 = vlog2.pop %v33
    %v35 = vmul.f32 %v34, 0.6931472
    %vm36 = vcmask 156672
    %v37 = vsel %vm36, %v27, 0.0
    %38 = vadd.xlane.f32.xlu0 %v37
    %v39 = vpop.xlane.xlu0 %38
    %v40 = vrcp.pop %v39
    %v41 = vmul.f32 1.0, %v40
    %v42 = vmul.f32 %v32, %v27
    %v43 = vsel %vm36, %v42, 0.0
    %44 = vadd.xlane.f32.xlu0 %v43
    %v45 = vpop.xlane.xlu0 %44
    %v46 = vmul.f32 %v35, %v27
    %v47 = vsel %vm36, %v46, 0.0
    %48 = vadd.xlane.f32.xlu0 %v47
    %v49 = vpop.xlane.xlu0 %48
    %v50 = vmul.f32 %v45, %v41
    %vm51 = vcmask 1024
    %v52 = vsel %vm51, %v50, 0.0
    %53 = vadd.xlane.f32.xlu0 %v52
    %v54 = vpop.xlane.xlu0 %53
    %v55 = vrot.slane %v54, 4
    %v56 = vadd.f32 %v54, %v55
    %v57 = vrot.slane %v56, 2
    %v58 = vadd.f32 %v56, %v57
    %v59 = vrot.slane %v58, 1
    %v60 = vadd.f32 %v58, %v59
    %s61 = vtos %v60
    %s62 = smul.f32 %s61, 0.5
    %s63 = ssub.f32 0.0, %s62
    %65 = vrot.lane.b32.xlu0 %v35, 108
    %v66 = vpop.permute.xlu0 %65
    %v68 = vsel %vm51, %v66, 0.0
    %69 = vadd.xlane.f32.xlu0 %v68
    %v70 = vpop.xlane.xlu0 %69
    %v71 = vrot.slane %v70, 4
    %v72 = vadd.f32 %v70, %v71
    %v73 = vrot.slane %v72, 2
    %v74 = vadd.f32 %v72, %v73
    %v75 = vrot.slane %v74, 1
    %v76 = vadd.f32 %v74, %v75
    %s77 = vtos %v76
    %s78 = smul.f32 %s77, 0.5
    %s79 = ssub.f32 0.0, %s78
    %v80 = vmul.f32 %v49, %v41
    %v81 = vsel %vm51, %v80, 0.0
    %82 = vadd.xlane.f32.xlu0 %v81
    %v83 = vpop.xlane.xlu0 %82
    %v84 = vrot.slane %v83, 4
    %v85 = vadd.f32 %v83, %v84
    %v86 = vrot.slane %v85, 2
    %v87 = vadd.f32 %v85, %v86
    %v88 = vrot.slane %v87, 1
    %v89 = vadd.f32 %v87, %v88
    %s90 = vtos %v89
    %s91 = smul.f32 %s90, 0.5
    %s92 = ssub.f32 0.0, %s91
    %s93 = sadd.f32 %s63, %s79
    %s94 = sadd.f32 %s93, %s92
    %s95 = scalar_lea.smem [#allocation5], 0
    %96 = sst [smem:[%s95]] %s94
    %s97 = scalar_lea.smem [#allocation5], 1
    %98 = sst [smem:[%s97]] %s63
    %s99 = scalar_lea.smem [#allocation5], 2
    %100 = sst [smem:[%s99]] %s79
    %s101 = scalar_lea.smem [#allocation5], 3
    %102 = sst [smem:[%s101]] %s92
    // Predicated region
    $region18: #{asmloc_base_loss.1} parent=1 // pred_check
      _
    $region19: #{asmloc_base_loss.1} parent=1 // pred_check_branch
      %104 = sbr.rel (0) target = $region21
    $region20: #{asmloc_base_loss.1} parent=1 // pred_region
      %s106 = ssub.s32 16, 16
      %107 = vsyncadd [#allocation4], %s106
      %s109 = sshll.u32 %s3, 4
      %s110 = int_to_ptr.vmem [resolvable:$true] %s109
      %112 = dma.smem_to_vmem [#allocation5], 16, %s110, [#allocation4]
    $region21: #{asmloc_base_loss.1} parent=1 // pred_fallthru
      _
    // Predicated region
    $region22: #{asmloc_base_loss.1} parent=1 // pred_check
      _
    $region23: #{asmloc_base_loss.1} parent=1 // pred_check_branch
      %114 = sbr.rel (0) target = $region25
    $region24: #{asmloc_base_loss.1} parent=1 // pred_region
      %115 = dma.done [#allocation4], 16
    $region25: #{asmloc_base_loss.1} parent=1 // pred_fallthru
      _
    %116 = sfence
    %117 = vsyncpa [#allocation3], 1
    %118 = vsyncpa [#allocation4], 1

</llo_original>
